<compile_context>
chip_gen: v5e
topology: v5e:2x2
jax: 0.10.0
libtpu: 0.0.40
codegen_flags: <defaults>
</compile_context>

<pallas_src>
import jax
import jax.numpy as jnp
from jax.experimental import pallas as pl
from jax.experimental.pallas import tpu as pltpu


# ----------------------------------------------------------------------------
# helpers
# ----------------------------------------------------------------------------
def _round_up(x, m):
    return ((x + m - 1) // m) * m


def _cdiv(a, b):
    return -(-a // b)


def _vmem_capacity_bytes():
    """Physical VMEM of the current TPU generation (conservative fallback)."""
    try:
        info_fn = getattr(pltpu, "get_tpu_info", None)
        if info_fn is not None:
            cap = getattr(info_fn(), "vmem_capacity_bytes", None)
            if cap:
                return int(cap)
    except Exception:
        pass
    return 64 * 1024 * 1024  # v7x per-core VMEM — safe lower bound everywhere


def _vmem_tile_bytes(rows, cols, dtype):
    """VMEM footprint of a [rows, cols] tile after (sublane, lane) padding."""
    itemsize = jnp.dtype(dtype).itemsize
    sublane = 8 * max(1, 4 // itemsize)          # f32 -> 8, bf16 -> 16
    return (_round_up(max(int(rows), 1), sublane)
            * _round_up(max(int(cols), 1), 128) * itemsize)


def _estimate_vmem_bytes(tile, nfeat, packed, out_pad, compute_dtype,
                         x_buffers, w_buffers):
    total = x_buffers * _vmem_tile_bytes(tile, nfeat, compute_dtype)
    total += 2 * _vmem_tile_bytes(tile, out_pad, jnp.float32)     # output tile
    widest = out_pad
    for (Wl, bl) in packed:
        total += w_buffers * _vmem_tile_bytes(Wl.shape[1], Wl.shape[2], Wl.dtype)
        total += w_buffers * _vmem_tile_bytes(bl.shape[1], bl.shape[2], bl.dtype)
        widest = max(widest, Wl.shape[2])
    # headroom for in-flight f32 activation temporaries
    total += 4 * _vmem_tile_bytes(tile, widest, jnp.float32)
    return total


def _select_tile(N, nfeat, packed, out_pad, compute_dtype, x_buffers,
                 w_buffers, budget, tile_n):
    n_ceil = _round_up(max(N, 1), 8)
    if tile_n is not None:
        return min(_round_up(tile_n, 8), n_ceil)
    tile = 8
    for cand in (4096, 2048, 1024, 512, 256, 128, 64, 32, 16, 8):
        t = min(cand, n_ceil)
        if _estimate_vmem_bytes(t, nfeat, packed, out_pad, compute_dtype,
                                x_buffers, w_buffers) <= budget:
            tile = t
            break
    # If the whole problem fits one tile, split in two so both v7x TCs get work.
    if tile >= N and N >= 16:
        tile = _round_up(_cdiv(N, 2), 8)
    return tile


def _block_spec(shape, index_map, buffers=2):
    """BlockSpec with optional non-default buffering (graceful fallback)."""
    if buffers != 2:
        try:
            return pl.BlockSpec(shape, index_map,
                                pipeline_mode=pl.Buffered(buffers))
        except Exception:
            pass
    return pl.BlockSpec(shape, index_map)


# ----------------------------------------------------------------------------
# weight packing: per-rule PyTorch layout -> stacked per-group [in, out]
# ----------------------------------------------------------------------------
def _pack_params(params, n_rules, group_width, out_pad, compute_dtype):
    """Pack rule weights into per-group stacked matrices.

    Returns (packed, rules_per_group, n_groups) where packed is a list of
    (W, b) with W: [n_groups, in_dim, out_dim] (already transposed for x @ W)
    and b: [n_groups, 1, out_dim] (f32).  Padded rules / output columns are
    exactly zero.
    """
    depth = len(params)
    F = params[0][0].shape[2]

    if depth == 1:
        rules_per_group = out_pad
    else:
        H = params[0][0].shape[1]
        rules_per_group = 1 if H >= group_width else max(1, group_width // H)
        rules_per_group = min(rules_per_group, out_pad)

    n_groups = _cdiv(n_rules, rules_per_group)
    padded_rules = n_groups * rules_per_group
    pad_r = padded_rules - n_rules

    def pad_rules(a):
        return jnp.pad(a, ((0, pad_r),) + ((0, 0),) * (a.ndim - 1))

    packed = []

    if depth == 1:
        W, b = params[0]                                       # [R,1,F], [R,1,1]
        Wt = pad_rules(jnp.transpose(W, (0, 2, 1)))            # [P,F,1]
        Wt = Wt.reshape(n_groups, rules_per_group, F)
        onehot = jnp.eye(rules_per_group, out_pad, dtype=jnp.float32)
        Wf = jnp.einsum('grf,rc->gfc', Wt, onehot)             # [G,F,OUT_PAD]
        bf = jnp.einsum('gr,rc->gc',
                        pad_rules(b).reshape(n_groups, rules_per_group),
                        onehot)[:, None, :]
        packed.append((Wf.astype(compute_dtype), bf.astype(jnp.float32)))
        return packed, rules_per_group, n_groups

    H = params[0][0].shape[1]
    GH = rules_per_group * H

    for layer_idx, (W, b) in enumerate(params):
        Wt = pad_rules(jnp.transpose(W, (0, 2, 1)))            # [P, in, out]
        bp = pad_rules(b)                                      # [P, 1, out]
        if layer_idx == 0:
            # shared input features: concat per-rule [F,H] along out -> [G,F,GH]
            Wf = (Wt.reshape(n_groups, rules_per_group, F, H)
                    .transpose(0, 2, 1, 3).reshape(n_groups, F, GH))
            bf = bp.reshape(n_groups, GH)[:, None, :]
        elif layer_idx < depth - 1:
            # hidden: block-diagonal within a group only -> [G, GH, GH]
            Wg = Wt.reshape(n_groups, rules_per_group, H, H)
            eye = jnp.eye(rules_per_group, dtype=Wg.dtype)
            Wf = jnp.einsum('grab,rs->grasb', Wg, eye).reshape(n_groups, GH, GH)
            bf = bp.reshape(n_groups, GH)[:, None, :]
        else:
            # last layer: rule r -> output column r, zero-padded to OUT_PAD lanes
            Wg = Wt.reshape(n_groups, rules_per_group, H)
            onehot = jnp.eye(rules_per_group, out_pad, dtype=Wg.dtype)
            Wf = jnp.einsum('gra,rc->grac', Wg, onehot).reshape(n_groups, GH, out_pad)
            bf = jnp.einsum('gr,rc->gc',
                            bp.reshape(n_groups, rules_per_group),
                            onehot)[:, None, :]
        packed.append((Wf.astype(compute_dtype), bf.astype(jnp.float32)))
    return packed, rules_per_group, n_groups


# ----------------------------------------------------------------------------
# kernel
# ----------------------------------------------------------------------------
def _grouped_mlp_kernel(x_ref, *refs):
    """One (node-tile, rule-group) step of the fused MLP.

    refs = (w0, b0, w1, b1, ..., w_{d-1}, b_{d-1}, out_ref)
      w_i : [1, in_i, out_i]  (block of the stacked per-group weight)
      b_i : [1, 1, out_i]     (f32)
    """
    out_ref = refs[-1]
    wb = refs[:-1]
    depth = len(wb) // 2

    h = x_ref[...]
    for i in range(depth):
        w = wb[2 * i][0]                 # [in, out]
        b = wb[2 * i + 1][0]             # [1, out]
        h = jnp.dot(h.astype(w.dtype), w, preferred_element_type=jnp.float32)
        h = h + b.astype(jnp.float32)
        if i < depth - 1:
            h = jnp.maximum(h, 0.0)      # ReLU on hidden layers only
            # dropout is identity in eval mode
    out_ref[...] = h.astype(out_ref.dtype)


# ----------------------------------------------------------------------------
# wrapper
# ----------------------------------------------------------------------------
def gfs_node_regression_forward(x, params, *, tile_n=None, group_width=128,
                                out_pad=128, compute_dtype=jnp.float32,
                                x_buffers=2, return_packed=False):
    """x: [N, nfeat] f32.
    params: list (length n_depth) of (W, b) with W:[n_rules, out, in],
    b:[n_rules, 1, out] (PyTorch nn.Linear convention).
    Returns list of n_rules arrays, each [N, 1] (PyTorch forward parity),
    or a packed [N, n_rules] array if return_packed=True.
    """
    n_rules = params[0][0].shape[0]
    N, F = x.shape

    # NOTE: in production, pack once and reuse across forward calls.
    packed, rules_per_group, n_groups = _pack_params(
        params, n_rules, group_width, out_pad, compute_dtype)

    vmem_cap = _vmem_capacity_bytes()
    budget = min(int(0.70 * vmem_cap), 96 * 1024 * 1024)
    w_buffers = 1 if n_groups == 1 else 2
    tile = _select_tile(N, F, packed, out_pad, compute_dtype,
                        x_buffers, w_buffers, budget, tile_n)

    n_pad = _round_up(N, tile)
    if n_pad != N:
        x = jnp.pad(x, ((0, n_pad - N), (0, 0)))
    x = x.astype(compute_dtype)

    in_specs = [_block_spec((tile, F), lambda i, g: (i, 0), buffers=x_buffers)]
    args = [x]
    for (Wl, bl) in packed:
        in_specs.append(_block_spec((1,) + Wl.shape[1:],
                                    lambda i, g: (g, 0, 0), buffers=w_buffers))
        in_specs.append(_block_spec((1,) + bl.shape[1:],
                                    lambda i, g: (g, 0, 0), buffers=w_buffers))
        args.append(Wl)
        args.append(bl)

    est = _estimate_vmem_bytes(tile, F, packed, out_pad, compute_dtype,
                               x_buffers, w_buffers)
    vmem_limit = int(min(0.9 * vmem_cap, max(est + (8 << 20), 32 << 20)))

    out = pl.pallas_call(
        _grouped_mlp_kernel,
        out_shape=jax.ShapeDtypeStruct((n_pad, n_groups * out_pad), jnp.float32),
        grid=(n_pad // tile, n_groups),
        in_specs=in_specs,
        out_specs=pl.BlockSpec((tile, out_pad), lambda i, g: (i, g)),
        compiler_params=pltpu.CompilerParams(
            dimension_semantics=("parallel", "parallel"),
            vmem_limit_bytes=vmem_limit,
        ),
    )(*args)

    out = out[:N]                                  # drop row padding
    cols = [(r // rules_per_group) * out_pad + (r % rules_per_group)
            for r in range(n_rules)]
    if return_packed:
        return out[:, jnp.asarray(cols)]           # [N, n_rules] packed slab
    # list-of-[N,1] API (slices of the lane-dense slab)
    return [out[:, c:c + 1] for c in cols]


# ----------------------------------------------------------------------------
# init + pure-JAX reference (PyTorch parity, eval mode)
# ----------------------------------------------------------------------------
def init_params(key, nfeat, n_rules, n_depth, hidden_dim):
    """Kaiming-normal-style init, stacked over rules
    (PyTorch layout: W [n_rules, out, in], b [n_rules, 1, out])."""
    if n_depth == 1:
        dims = [(nfeat, 1)]
    else:
        dims = [(nfeat, hidden_dim)]
        dims += [(hidden_dim, hidden_dim)] * (n_depth - 2)
        dims += [(hidden_dim, 1)]

    params = []
    for (in_dim, out_dim) in dims:
        key, kw, kb = jax.random.split(key, 3)
        std = (2.0 / in_dim) ** 0.5
        W = std * jax.random.normal(kw, (n_rules, out_dim, in_dim), jnp.float32)
        bound = 1.0 / (in_dim ** 0.5)
        b = jax.random.uniform(kb, (n_rules, 1, out_dim), jnp.float32,
                               minval=-bound, maxval=bound)
        params.append((W, b))
    return params


def reference_forward(x, params):
    """Pure-JAX f32 reference matching the PyTorch module (eval mode)."""
    n_rules = params[0][0].shape[0]
    outs = []
    for r in range(n_rules):
        h = x
        for i, (W, b) in enumerate(params):
            h = h @ W[r].T + b[r]
            if i < len(params) - 1:
                h = jnp.maximum(h, 0.0)
        outs.append(h)
    return outs


# ----------------------------------------------------------------------------
# tests
# ----------------------------------------------------------------------------
if __name__ == "__main__":
    N, nfeat, n_rules, n_depth, hidden_dim = 300, 32, 3, 3, 32

    key = jax.random.PRNGKey(0)
    kx, kp = jax.random.split(key)
    x = jax.random.normal(kx, (N, nfeat), jnp.float32)
    params = init_params(kp, nfeat, n_rules, n_depth, hidden_dim)
    ref_list = reference_forward(x, params)

    # 1) f32 path (exact parity with the PyTorch module, eval mode).
    res_list = gfs_node_regression_forward(x, params)
    res_list = [jax.block_until_ready(r) for r in res_list]
    for got, ref in zip(res_list, ref_list):
        assert got.shape == (N, 1)
        assert jnp.allclose(got, ref, atol=1e-4, rtol=1e-4)

    # 1b) packed lane-dense output path.
    packed_out = jax.block_until_ready(
        gfs_node_regression_forward(x, params, return_packed=True))
    assert packed_out.shape == (N, n_rules)
    assert jnp.allclose(packed_out, jnp.concatenate(ref_list, axis=1),
                        atol=1e-4, rtol=1e-4)

    # 2) bf16 MXU-input path (v6e/v7x HBM-traffic optimization), f32 accumulate.
    res_bf16 = gfs_node_regression_forward(x, params,
                                           compute_dtype=jnp.bfloat16)
    res_bf16 = [jax.block_until_ready(r) for r in res_bf16]
    for got, ref in zip(res_bf16, ref_list):
        assert got.shape == (N, 1)
        assert jnp.allclose(got, ref, atol=5e-2, rtol=5e-2)

    # 3) multi-group case: 6 rules, 4 rules per 128-wide group -> 2 groups.
    params6 = init_params(jax.random.PRNGKey(2), nfeat, 6, n_depth, hidden_dim)
    ref6 = reference_forward(x, params6)
    res6 = gfs_node_regression_forward(x, params6)
    res6 = [jax.block_until_ready(r) for r in res6]
    for got, ref in zip(res6, ref6):
        assert got.shape == (N, 1)
        assert jnp.allclose(got, ref, atol=1e-4, rtol=1e-4)

    # 4) depth == 1 special case of the module (single Linear(nfeat, 1)).
    params1 = init_params(jax.random.PRNGKey(1), nfeat, 2, 1, hidden_dim)
    ref1 = reference_forward(x, params1)
    res1 = gfs_node_regression_forward(x, params1)
    res1 = [jax.block_until_ready(r) for r in res1]
    for got, ref in zip(res1, ref1):
        assert got.shape == (N, 1)
        assert jnp.allclose(got, ref, atol=1e-4, rtol=1e-4)

    print("KERNEL_OK")
</pallas_src>

<mosaic_0001>
module attributes {stable_mosaic.version = 11 : i64} {
  func.func @_grouped_mlp_kernel(%arg0: i32, %arg1: i32, %arg2: memref<152x32xf32, #tpu.memory_space<vmem>>, %arg3: memref<1x32x128xf32, #tpu.memory_space<vmem>>, %arg4: memref<1x1x128xf32, #tpu.memory_space<vmem>>, %arg5: memref<1x128x128xf32, #tpu.memory_space<vmem>>, %arg6: memref<1x1x128xf32, #tpu.memory_space<vmem>>, %arg7: memref<1x128x128xf32, #tpu.memory_space<vmem>>, %arg8: memref<1x1x128xf32, #tpu.memory_space<vmem>>, %arg9: memref<152x128xf32, #tpu.memory_space<vmem>>) attributes {dimension_semantics = [#tpu.dimension_semantics<parallel>, #tpu.dimension_semantics<parallel>], iteration_bounds = array<i64: 2, 1>, scalar_prefetch = 0 : i64, scratch_operands = 0 : i64, tpu.core_type = #tpu.core_type<tc>, window_params = [{transform_indices = @transform_0, window_bounds = array<i64: 152, 32>}, {pipeline_mode = #tpu.pipeline_mode<synchronous>, transform_indices = @transform_1, window_bounds = array<i64: 1, 32, 128>}, {pipeline_mode = #tpu.pipeline_mode<synchronous>, transform_indices = @transform_2, window_bounds = array<i64: 1, 1, 128>}, {pipeline_mode = #tpu.pipeline_mode<synchronous>, transform_indices = @transform_3, window_bounds = array<i64: 1, 128, 128>}, {pipeline_mode = #tpu.pipeline_mode<synchronous>, transform_indices = @transform_4, window_bounds = array<i64: 1, 1, 128>}, {pipeline_mode = #tpu.pipeline_mode<synchronous>, transform_indices = @transform_5, window_bounds = array<i64: 1, 128, 128>}, {pipeline_mode = #tpu.pipeline_mode<synchronous>, transform_indices = @transform_6, window_bounds = array<i64: 1, 1, 128>}, {transform_indices = @transform_7, window_bounds = array<i64: 152, 128>}]} {
    %c0 = arith.constant 0 : index
    %c0_0 = arith.constant 0 : index
    %0 = vector.load %arg2[%c0, %c0_0] : memref<152x32xf32, #tpu.memory_space<vmem>>, vector<152x32xf32>
    %c0_1 = arith.constant 0 : index
    %c0_2 = arith.constant 0 : index
    %c0_3 = arith.constant 0 : index
    %1 = vector.load %arg3[%c0_1, %c0_2, %c0_3] : memref<1x32x128xf32, #tpu.memory_space<vmem>>, vector<1x32x128xf32>
    %2 = vector.shape_cast %1 : vector<1x32x128xf32> to vector<32x128xf32>
    %c0_4 = arith.constant 0 : index
    %c0_5 = arith.constant 0 : index
    %c0_6 = arith.constant 0 : index
    %3 = vector.load %arg4[%c0_4, %c0_5, %c0_6] : memref<1x1x128xf32, #tpu.memory_space<vmem>>, vector<1x1x128xf32>
    %4 = vector.shape_cast %3 : vector<1x1x128xf32> to vector<1x128xf32>
    %cst = arith.constant dense<0.000000e+00> : vector<152x128xf32>
    %5 = tpu.matmul %0, %2, %cst {dimension_numbers = #tpu.dot_dimension_numbers<[1], [0], [0], [1], [0, 0, 1, 1], [], []>} : vector<152x32xf32>, vector<32x128xf32>, vector<152x128xf32> -> vector<152x128xf32>
    %6 = vector.broadcast %4 : vector<1x128xf32> to vector<152x128xf32>
    %7 = arith.addf %5, %6 : vector<152x128xf32>
    %cst_7 = arith.constant 0.000000e+00 : f32
    %8 = vector.broadcast %cst_7 : f32 to vector<152x128xf32>
    %9 = arith.maximumf %7, %8 : vector<152x128xf32>
    %c0_8 = arith.constant 0 : index
    %c0_9 = arith.constant 0 : index
    %c0_10 = arith.constant 0 : index
    %10 = vector.load %arg5[%c0_8, %c0_9, %c0_10] : memref<1x128x128xf32, #tpu.memory_space<vmem>>, vector<1x128x128xf32>
    %11 = vector.shape_cast %10 : vector<1x128x128xf32> to vector<128x128xf32>
    %c0_11 = arith.constant 0 : index
    %c0_12 = arith.constant 0 : index
    %c0_13 = arith.constant 0 : index
    %12 = vector.load %arg6[%c0_11, %c0_12, %c0_13] : memref<1x1x128xf32, #tpu.memory_space<vmem>>, vector<1x1x128xf32>
    %13 = vector.shape_cast %12 : vector<1x1x128xf32> to vector<1x128xf32>
    %cst_14 = arith.constant dense<0.000000e+00> : vector<152x128xf32>
    %14 = tpu.matmul %9, %11, %cst_14 {dimension_numbers = #tpu.dot_dimension_numbers<[1], [0], [0], [1], [0, 0, 1, 1], [], []>} : vector<152x128xf32>, vector<128x128xf32>, vector<152x128xf32> -> vector<152x128xf32>
    %15 = vector.broadcast %13 : vector<1x128xf32> to vector<152x128xf32>
    %16 = arith.addf %14, %15 : vector<152x128xf32>
    %cst_15 = arith.constant 0.000000e+00 : f32
    %17 = vector.broadcast %cst_15 : f32 to vector<152x128xf32>
    %18 = arith.maximumf %16, %17 : vector<152x128xf32>
    %c0_16 = arith.constant 0 : index
    %c0_17 = arith.constant 0 : index
    %c0_18 = arith.constant 0 : index
    %19 = vector.load %arg7[%c0_16, %c0_17, %c0_18] : memref<1x128x128xf32, #tpu.memory_space<vmem>>, vector<1x128x128xf32>
    %20 = vector.shape_cast %19 : vector<1x128x128xf32> to vector<128x128xf32>
    %c0_19 = arith.constant 0 : index
    %c0_20 = arith.constant 0 : index
    %c0_21 = arith.constant 0 : index
    %21 = vector.load %arg8[%c0_19, %c0_20, %c0_21] : memref<1x1x128xf32, #tpu.memory_space<vmem>>, vector<1x1x128xf32>
    %22 = vector.shape_cast %21 : vector<1x1x128xf32> to vector<1x128xf32>
    %cst_22 = arith.constant dense<0.000000e+00> : vector<152x128xf32>
    %23 = tpu.matmul %18, %20, %cst_22 {dimension_numbers = #tpu.dot_dimension_numbers<[1], [0], [0], [1], [0, 0, 1, 1], [], []>} : vector<152x128xf32>, vector<128x128xf32>, vector<152x128xf32> -> vector<152x128xf32>
    %24 = vector.broadcast %22 : vector<1x128xf32> to vector<152x128xf32>
    %25 = arith.addf %23, %24 : vector<152x128xf32>
    %c0_23 = arith.constant 0 : index
    %c0_24 = arith.constant 0 : index
    %26 = vector.load %arg9[%c0_23, %c0_24] : memref<152x128xf32, #tpu.memory_space<vmem>>, vector<152x128xf32>
    tpu.vector_store %arg9[%c0_23, %c0_24], %25 {strides = array<i32>} : memref<152x128xf32, #tpu.memory_space<vmem>>, vector<152x128xf32>,
    return
  }
  func.func @transform_0(%arg0: i32, %arg1: i32) -> (i32, i32) {
    %c0_i32 = arith.constant 0 : i32
    %c0_i32_0 = arith.constant 0 : i32
    return %arg0, %c0_i32 : i32, i32
  }
  func.func @transform_1(%arg0: i32, %arg1: i32) -> (i32, i32, i32) {
    %c0_i32 = arith.constant 0 : i32
    %c0_i32_0 = arith.constant 0 : i32
    %c0_i32_1 = arith.constant 0 : i32
    return %arg1, %c0_i32, %c0_i32_0 : i32, i32, i32
  }
  func.func @transform_2(%arg0: i32, %arg1: i32) -> (i32, i32, i32) {
    %c0_i32 = arith.constant 0 : i32
    %c0_i32_0 = arith.constant 0 : i32
    %c0_i32_1 = arith.constant 0 : i32
    return %arg1, %c0_i32, %c0_i32_0 : i32, i32, i32
  }
  func.func @transform_3(%arg0: i32, %arg1: i32) -> (i32, i32, i32) {
    %c0_i32 = arith.constant 0 : i32
    %c0_i32_0 = arith.constant 0 : i32
    %c0_i32_1 = arith.constant 0 : i32
    return %arg1, %c0_i32, %c0_i32_0 : i32, i32, i32
  }
  func.func @transform_4(%arg0: i32, %arg1: i32) -> (i32, i32, i32) {
    %c0_i32 = arith.constant 0 : i32
    %c0_i32_0 = arith.constant 0 : i32
    %c0_i32_1 = arith.constant 0 : i32
    return %arg1, %c0_i32, %c0_i32_0 : i32, i32, i32
  }
  func.func @transform_5(%arg0: i32, %arg1: i32) -> (i32, i32, i32) {
    %c0_i32 = arith.constant 0 : i32
    %c0_i32_0 = arith.constant 0 : i32
    %c0_i32_1 = arith.constant 0 : i32
    return %arg1, %c0_i32, %c0_i32_0 : i32, i32, i32
  }
  func.func @transform_6(%arg0: i32, %arg1: i32) -> (i32, i32, i32) {
    %c0_i32 = arith.constant 0 : i32
    %c0_i32_0 = arith.constant 0 : i32
    %c0_i32_1 = arith.constant 0 : i32
    return %arg1, %c0_i32, %c0_i32_0 : i32, i32, i32
  }
  func.func @transform_7(%arg0: i32, %arg1: i32) -> (i32, i32) {
    %c0_i32 = arith.constant 0 : i32
    return %arg0, %arg1 : i32, i32
  }
}

</mosaic_0001>

<llo_original>
// kernel: tpu_custom_call.1
$region0: #{tpu_custom_call.1}
  #allocation0 [shape = 'u32[]', space=smem, size = 0x4, offset = 0x4, fixed_abs, tag = 'smem constant byte address 0x4 - core index']
  #allocation1 [shape = 'u32[72,128]{1,0:T(1,128)}', space=vmem, size = 0x9000, scoped, tag = 'internal scratch']
  %s0 = inlined_call_operand.vmem [shape: f32[304,32], index: 0, kind: input, shape index: {}]
  %s1 = inlined_call_operand.vmem [shape: f32[1,32,128], index: 1, kind: input, shape index: {}]
  %s2 = inlined_call_operand.vmem [shape: f32[1,1,128], index: 2, kind: input, shape index: {}]
  %s3 = inlined_call_operand.vmem [shape: f32[1,128,128], index: 3, kind: input, shape index: {}]
  %s4 = inlined_call_operand.vmem [shape: f32[1,1,128], index: 4, kind: input, shape index: {}]
  %s5 = inlined_call_operand.vmem [shape: f32[1,128,128], index: 5, kind: input, shape index: {}]
  %s6 = inlined_call_operand.vmem [shape: f32[1,1,128], index: 6, kind: input, shape index: {}]
  %s7 = inlined_call_operand.hbm [shape: f32[304,128], index: 7, kind: output, shape index: {}]
  %s8 = sld [smem:[#allocation0]]
  $region61: #{tpu_custom_call.1} parent=0
    _
  %s10 = ssub.s32 1, %s8
  %s11 = scalar_select 0, %s10, %s8
  $region1: #{tpu_custom_call.1} parent=0
    #allocation2 [shape = 'u8[155648]{0}', space=vmem, size = 0x26000, scoped, tag = 'output window, operand 0']
    #allocation3 [shape = 's32[2]{0}', space=sflag, size = 0x8, scoped, tag = 'scoped memory for tpu_custom_call.1']
    %12 = vsyncpa [#allocation3], 0
    %s13 = scalar_lea.sflag [#allocation3], 1
    %14 = vsyncpa %s13, 0
    loop: start=0, step=1, limit=4
    $region2: #{tpu_custom_call.1} parent=1 // loop_pre_header
      _
    $region3: #{tpu_custom_call.1} parent=1 // loop_header
      %s16 = sphi 0, %s20
      %p17 = scmp.ge.s32.totalorder %s16, 4
      %s23 = sphi 0, %s35
      %s24 = sphi 0, %s31
      %s25 = sphi 0, %s23
      %s26 = sphi 0, %s24
      %s27 = sphi 0, %s25
      %s28 = sphi 0, %s26
      %s38 = sphi 0, %s40
      %s41 = sphi 0, %s38
      %s42 = sphi 0, %s41
      %s58 = sphi 0, %s42
      %s64 = sphi 0, %s66
      %s67 = sphi 0, %s64
      %s68 = sphi 0, %s67
      %s84 = sphi 0, %s68
      %s90 = sphi 0, %s92
      %s93 = sphi 0, %s90
      %s94 = sphi 0, %s93
      %s110 = sphi 0, %s94
      %s116 = sphi 0, %s118
      %s119 = sphi 0, %s116
      %s120 = sphi 0, %s119
      %s136 = sphi 0, %s120
      %s142 = sphi 0, %s144
      %s145 = sphi 0, %s142
      %s146 = sphi 0, %s145
      %s162 = sphi 0, %s146
      %s168 = sphi 0, %s170
      %s171 = sphi 0, %s168
      %s172 = sphi 0, %s171
      %s188 = sphi 0, %s172
      %s194 = sphi 0, %s196
      %s197 = sphi 0, %s194
      %s198 = sphi 0, %s197
      %s214 = sphi 0, %s198
      %s222 = sphi 0, %s224
      %s225 = sphi 0, %s222
      %s226 = sphi 0, %s225
      %s242 = sphi 0, %s226
    $region4: #{tpu_custom_call.1} parent=1 // loop_header_branch
      %19 = sbr.rel (%p17) target = $region8
    $region5: #{tpu_custom_call.1} parent=1 // loop_body
      %s21 = ssub.s32 %s16, 1
      %s22 = ssub.s32 %s16, 2
      %s29 = sadd.s32 1, %s24
      %p30 = scmp.ge.s32.totalorder %s29, 1
      %s31 = scalar_select %p30, 0, %s29
      %s32 = sadd.s32 1, %s23
      %s33 = scalar_select %p30, %s32, %s23
      %p34 = scmp.ge.s32.totalorder %s33, 2
      %s35 = scalar_select %p34, 0, %s33
      %s36 = ssub.s32 %s23, %s35
      %p37 = scmp.eq.s32.totalorder %s36, 0
      %s39 = sadd.s32 %s38, 1
      %s40 = scalar_select %p37, %s38, %s39
      %p43 = pneg %p37
      %p44 = scmp.eq.s32.totalorder %s16, 1
      %p45 = por %p43, %p44
      %p46 = scmp.ne.s32.totalorder %s38, %s41
      %p47 = scmp.eq.s32.totalorder %s16, 0
      %p48 = por %p46, %p47
      %p49 = scmp.ne.s32.totalorder %s38, %s41
      %p50 = scmp.eq.s32.totalorder %s21, 1
      %p51 = por %p49, %p50
      %p52 = scmp.ne.s32.totalorder %s41, %s42
      %p53 = scmp.eq.s32.totalorder %s21, 0
      %p54 = por %p52, %p53
      %p55 = scmp.ne.s32.totalorder %s41, %s42
      %p56 = scmp.eq.s32.totalorder %s22, 1
      %p57 = por %p55, %p56
      %p59 = scmp.ne.s32.totalorder %s42, %s58
      %p60 = scmp.eq.s32.totalorder %s22, 0
      %p61 = por %p59, %p60
      %s62 = ssub.s32 %s24, %s31
      %p63 = scmp.eq.s32.totalorder %s62, 0
      %s65 = sadd.s32 %s64, 1
      %s66 = scalar_select %p63, %s64, %s65
      %p69 = pneg %p63
      %p70 = scmp.eq.s32.totalorder %s16, 1
      %p71 = por %p69, %p70
      %p72 = scmp.ne.s32.totalorder %s64, %s67
      %p73 = scmp.eq.s32.totalorder %s16, 0
      %p74 = por %p72, %p73
      %p75 = scmp.ne.s32.totalorder %s64, %s67
      %p76 = scmp.eq.s32.totalorder %s21, 1
      %p77 = por %p75, %p76
      %p78 = scmp.ne.s32.totalorder %s67, %s68
      %p79 = scmp.eq.s32.totalorder %s21, 0
      %p80 = por %p78, %p79
      %p81 = scmp.ne.s32.totalorder %s67, %s68
      %p82 = scmp.eq.s32.totalorder %s22, 1
      %p83 = por %p81, %p82
      %p85 = scmp.ne.s32.totalorder %s68, %s84
      %p86 = scmp.eq.s32.totalorder %s22, 0
      %p87 = por %p85, %p86
      %s88 = ssub.s32 %s24, %s31
      %p89 = scmp.eq.s32.totalorder %s88, 0
      %s91 = sadd.s32 %s90, 1
      %s92 = scalar_select %p89, %s90, %s91
      %p95 = pneg %p89
      %p96 = scmp.eq.s32.totalorder %s16, 1
      %p97 = por %p95, %p96
      %p98 = scmp.ne.s32.totalorder %s90, %s93
      %p99 = scmp.eq.s32.totalorder %s16, 0
      %p100 = por %p98, %p99
      %p101 = scmp.ne.s32.totalorder %s90, %s93
      %p102 = scmp.eq.s32.totalorder %s21, 1
      %p103 = por %p101, %p102
      %p104 = scmp.ne.s32.totalorder %s93, %s94
      %p105 = scmp.eq.s32.totalorder %s21, 0
      %p106 = por %p104, %p105
      %p107 = scmp.ne.s32.totalorder %s93, %s94
      %p108 = scmp.eq.s32.totalorder %s22, 1
      %p109 = por %p107, %p108
      %p111 = scmp.ne.s32.totalorder %s94, %s110
      %p112 = scmp.eq.s32.totalorder %s22, 0
      %p113 = por %p111, %p112
      %s114 = ssub.s32 %s24, %s31
      %p115 = scmp.eq.s32.totalorder %s114, 0
      %s117 = sadd.s32 %s116, 1
      %s118 = scalar_select %p115, %s116, %s117
      %p121 = pneg %p115
      %p122 = scmp.eq.s32.totalorder %s16, 1
      %p123 = por %p121, %p122
      %p124 = scmp.ne.s32.totalorder %s116, %s119
      %p125 = scmp.eq.s32.totalorder %s16, 0
      %p126 = por %p124, %p125
      %p127 = scmp.ne.s32.totalorder %s116, %s119
      %p128 = scmp.eq.s32.totalorder %s21, 1
      %p129 = por %p127, %p128
      %p130 = scmp.ne.s32.totalorder %s119, %s120
      %p131 = scmp.eq.s32.totalorder %s21, 0
      %p132 = por %p130, %p131
      %p133 = scmp.ne.s32.totalorder %s119, %s120
      %p134 = scmp.eq.s32.totalorder %s22, 1
      %p135 = por %p133, %p134
      %p137 = scmp.ne.s32.totalorder %s120, %s136
      %p138 = scmp.eq.s32.totalorder %s22, 0
      %p139 = por %p137, %p138
      %s140 = ssub.s32 %s24, %s31
      %p141 = scmp.eq.s32.totalorder %s140, 0
      %s143 = sadd.s32 %s142, 1
      %s144 = scalar_select %p141, %s142, %s143
      %p147 = pneg %p141
      %p148 = scmp.eq.s32.totalorder %s16, 1
      %p149 = por %p147, %p148
      %p150 = scmp.ne.s32.totalorder %s142, %s145
      %p151 = scmp.eq.s32.totalorder %s16, 0
      %p152 = por %p150, %p151
      %p153 = scmp.ne.s32.totalorder %s142, %s145
      %p154 = scmp.eq.s32.totalorder %s21, 1
      %p155 = por %p153, %p154
      %p156 = scmp.ne.s32.totalorder %s145, %s146
      %p157 = scmp.eq.s32.totalorder %s21, 0
      %p158 = por %p156, %p157
      %p159 = scmp.ne.s32.totalorder %s145, %s146
      %p160 = scmp.eq.s32.totalorder %s22, 1
      %p161 = por %p159, %p160
      %p163 = scmp.ne.s32.totalorder %s146, %s162
      %p164 = scmp.eq.s32.totalorder %s22, 0
      %p165 = por %p163, %p164
      %s166 = ssub.s32 %s24, %s31
      %p167 = scmp.eq.s32.totalorder %s166, 0
      %s169 = sadd.s32 %s168, 1
      %s170 = scalar_select %p167, %s168, %s169
      %p173 = pneg %p167
      %p174 = scmp.eq.s32.totalorder %s16, 1
      %p175 = por %p173, %p174
      %p176 = scmp.ne.s32.totalorder %s168, %s171
      %p177 = scmp.eq.s32.totalorder %s16, 0
      %p178 = por %p176, %p177
      %p179 = scmp.ne.s32.totalorder %s168, %s171
      %p180 = scmp.eq.s32.totalorder %s21, 1
      %p181 = por %p179, %p180
      %p182 = scmp.ne.s32.totalorder %s171, %s172
      %p183 = scmp.eq.s32.totalorder %s21, 0
      %p184 = por %p182, %p183
      %p185 = scmp.ne.s32.totalorder %s171, %s172
      %p186 = scmp.eq.s32.totalorder %s22, 1
      %p187 = por %p185, %p186
      %p189 = scmp.ne.s32.totalorder %s172, %s188
      %p190 = scmp.eq.s32.totalorder %s22, 0
      %p191 = por %p189, %p190
      %s192 = ssub.s32 %s24, %s31
      %p193 = scmp.eq.s32.totalorder %s192, 0
      %s195 = sadd.s32 %s194, 1
      %s196 = scalar_select %p193, %s194, %s195
      %p199 = pneg %p193
      %p200 = scmp.eq.s32.totalorder %s16, 1
      %p201 = por %p199, %p200
      %p202 = scmp.ne.s32.totalorder %s194, %s197
      %p203 = scmp.eq.s32.totalorder %s16, 0
      %p204 = por %p202, %p203
      %p205 = scmp.ne.s32.totalorder %s194, %s197
      %p206 = scmp.eq.s32.totalorder %s21, 1
      %p207 = por %p205, %p206
      %p208 = scmp.ne.s32.totalorder %s197, %s198
      %p209 = scmp.eq.s32.totalorder %s21, 0
      %p210 = por %p208, %p209
      %p211 = scmp.ne.s32.totalorder %s197, %s198
      %p212 = scmp.eq.s32.totalorder %s22, 1
      %p213 = por %p211, %p212
      %p215 = scmp.ne.s32.totalorder %s198, %s214
      %p216 = scmp.eq.s32.totalorder %s22, 0
      %p217 = por %p215, %p216
      %s218 = ssub.s32 %s23, %s35
      %s219 = ssub.s32 %s24, %s31
      %s220 = sor.u32 %s218, %s219
      %p221 = scmp.eq.s32.totalorder %s220, 0
      %s223 = sadd.s32 %s222, 1
      %s224 = scalar_select %p221, %s222, %s223
      %p227 = pneg %p221
      %p228 = scmp.eq.s32.totalorder %s16, 1
      %p229 = por %p227, %p228
      %p230 = scmp.ne.s32.totalorder %s222, %s225
      %p231 = scmp.eq.s32.totalorder %s16, 0
      %p232 = por %p230, %p231
      %p233 = scmp.ne.s32.totalorder %s222, %s225
      %p234 = scmp.eq.s32.totalorder %s21, 1
      %p235 = por %p233, %p234
      %p236 = scmp.ne.s32.totalorder %s225, %s226
      %p237 = scmp.eq.s32.totalorder %s21, 0
      %p238 = por %p236, %p237
      %p239 = scmp.ne.s32.totalorder %s225, %s226
      %p240 = scmp.eq.s32.totalorder %s22, 1
      %p241 = por %p239, %p240
      %p243 = scmp.ne.s32.totalorder %s226, %s242
      %p244 = scmp.eq.s32.totalorder %s22, 0
      %p245 = por %p243, %p244
      %p246 = scmp.le.s32.totalorder 1, %s16
      %p247 = scmp.lt.s32.totalorder %s16, 3
      %p248 = pnand %p246, %p247
      %p249 = pneg %p248
      // Predicated region
      $region9: #{tpu_custom_call.1} parent=5 // pred_check
        _
      $region10: #{tpu_custom_call.1} parent=5 // pred_check_branch
        %251 = sbr.rel (%p248) target = $region12
      $region11: #{tpu_custom_call.1} parent=5 // pred_region
        %s252 = ssub.s32 %s16, 1
        // Predicated region
        $region13: #{tpu_custom_call.1} parent=11 // pred_check
          %p253 = pneg %p80
        $region14: #{tpu_custom_call.1} parent=11 // pred_check_branch
          %255 = sbr.rel (%p253) target = $region16
        $region15: #{tpu_custom_call.1} parent=11 // pred_region
          %p256 = scmp.lt.s32.totalorder %s26, 0
          %s257 = scalar_select %p256, %s26, 0
          %s258 = smul.addr %s257, 4
          %s259 = smul.addr %s258, 8
          %s260 = scalar_lea.vmem %s1, %s259
        $region16: #{tpu_custom_call.1} parent=11 // pred_fallthru
          _
        // Predicated region
        $region17: #{tpu_custom_call.1} parent=11 // pred_check
          %p261 = pneg %p106
        $region18: #{tpu_custom_call.1} parent=11 // pred_check_branch
          %263 = sbr.rel (%p261) target = $region20
        $region19: #{tpu_custom_call.1} parent=11 // pred_region
          %p264 = scmp.lt.s32.totalorder %s26, 0
          %s265 = scalar_select %p264, %s26, 0
          %s266 = scalar_lea.vmem %s2, %s265
        $region20: #{tpu_custom_call.1} parent=11 // pred_fallthru
          _
        // Predicated region
        $region21: #{tpu_custom_call.1} parent=11 // pred_check
          %p267 = pneg %p132
        $region22: #{tpu_custom_call.1} parent=11 // pred_check_branch
          %269 = sbr.rel (%p267) target = $region24
        $region23: #{tpu_custom_call.1} parent=11 // pred_region
          %p270 = scmp.lt.s32.totalorder %s26, 0
          %s271 = scalar_select %p270, %s26, 0
          %s272 = smul.addr %s271, 16
          %s273 = smul.addr %s272, 8
          %s274 = scalar_lea.vmem %s3, %s273
        $region24: #{tpu_custom_call.1} parent=11 // pred_fallthru
          _
        // Predicated region
        $region25: #{tpu_custom_call.1} parent=11 // pred_check
          %p275 = pneg %p158
        $region26: #{tpu_custom_call.1} parent=11 // pred_check_branch
          %277 = sbr.rel (%p275) target = $region28
        $region27: #{tpu_custom_call.1} parent=11 // pred_region
          %p278 = scmp.lt.s32.totalorder %s26, 0
          %s279 = scalar_select %p278, %s26, 0
          %s280 = scalar_lea.vmem %s4, %s279
        $region28: #{tpu_custom_call.1} parent=11 // pred_fallthru
          _
        // Predicated region
        $region29: #{tpu_custom_call.1} parent=11 // pred_check
          %p281 = pneg %p184
        $region30: #{tpu_custom_call.1} parent=11 // pred_check_branch
          %283 = sbr.rel (%p281) target = $region32
        $region31: #{tpu_custom_call.1} parent=11 // pred_region
          %p284 = scmp.lt.s32.totalorder %s26, 0
          %s285 = scalar_select %p284, %s26, 0
          %s286 = smul.addr %s285, 16
          %s287 = smul.addr %s286, 8
          %s288 = scalar_lea.vmem %s5, %s287
        $region32: #{tpu_custom_call.1} parent=11 // pred_fallthru
          _
        // Predicated region
        $region33: #{tpu_custom_call.1} parent=11 // pred_check
          %p289 = pneg %p210
        $region34: #{tpu_custom_call.1} parent=11 // pred_check_branch
          %291 = sbr.rel (%p289) target = $region36
        $region35: #{tpu_custom_call.1} parent=11 // pred_region
          %p292 = scmp.lt.s32.totalorder %s26, 0
          %s293 = scalar_select %p292, %s26, 0
          %s294 = scalar_lea.vmem %s6, %s293
        $region36: #{tpu_custom_call.1} parent=11 // pred_fallthru
          _
      $region12: #{tpu_custom_call.1} parent=5 // pred_fallthru
        _
      %p295 = scmp.lt.s32.totalorder %s16, 2
      // Predicated region
      $region37: #{tpu_custom_call.1} parent=5 // pred_check
        %p296 = pneg %p295
      $region38: #{tpu_custom_call.1} parent=5 // pred_check_branch
        %298 = sbr.rel (%p296) target = $region40
      $region39: #{tpu_custom_call.1} parent=5 // pred_region
        // Predicated region
        $region41: #{tpu_custom_call.1} parent=39 // pred_check
          %p299 = pneg %p48
        $region42: #{tpu_custom_call.1} parent=39 // pred_check_branch
          %301 = sbr.rel (%p299) target = $region44
        $region43: #{tpu_custom_call.1} parent=39 // pred_region
          %s302 = smul.u32 19, %s23
          %p303 = scmp.lt.s32.totalorder %s302, 37
          %s304 = scalar_select %p303, %s302, 37
          %s305 = smul.addr %s304, 8
          %s306 = scalar_lea.vmem %s0, %s305
          %s307 = smul.u32 19, %s23
        $region44: #{tpu_custom_call.1} parent=39 // pred_fallthru
          _
      $region40: #{tpu_custom_call.1} parent=5 // pred_fallthru
        _
      %p308 = scmp.le.s32.totalorder 1, %s16
      %p309 = scmp.lt.s32.totalorder %s16, 3
      %p310 = pnand %p308, %p309
      %p311 = pneg %p310
      // Predicated region
      $region45: #{tpu_custom_call.1} parent=5 // pred_check
        _
      $region46: #{tpu_custom_call.1} parent=5 // pred_check_branch
        %313 = sbr.rel (%p310) target = $region48
      $region47: #{tpu_custom_call.1} parent=5 // pred_region
        %s314 = ssub.s32 %s16, 1
        %s315 = smul.u32 19, %s25
        %p316 = scmp.lt.s32.totalorder %s315, 37
        %s317 = scalar_select %p316, %s315, 37
        %s318 = smul.addr %s317, 8
        %s319 = scalar_lea.vmem %s0, %s318
        %p320 = pneg %p54
        %p321 = pneg %p51
        %p322 = scmp.lt.s32.totalorder %s26, 0
        %s323 = scalar_select %p322, %s26, 0
        %s324 = smul.addr %s323, 4
        %s325 = smul.addr %s324, 8
        %s326 = scalar_lea.vmem %s1, %s325
        %p327 = pneg %p80
        %p328 = pneg %p77
        %p329 = scmp.lt.s32.totalorder %s26, 0
        %s330 = scalar_select %p329, %s26, 0
        %s331 = scalar_lea.vmem %s2, %s330
        %p332 = pneg %p106
        %p333 = pneg %p103
        %p334 = scmp.lt.s32.totalorder %s26, 0
        %s335 = scalar_select %p334, %s26, 0
        %s336 = smul.addr %s335, 16
        %s337 = smul.addr %s336, 8
        %s338 = scalar_lea.vmem %s3, %s337
        %p339 = pneg %p132
        %p340 = pneg %p129
        %p341 = scmp.lt.s32.totalorder %s26, 0
        %s342 = scalar_select %p341, %s26, 0
        %s343 = scalar_lea.vmem %s4, %s342
        %p344 = pneg %p158
        %p345 = pneg %p155
        %p346 = scmp.lt.s32.totalorder %s26, 0
        %s347 = scalar_select %p346, %s26, 0
        %s348 = smul.addr %s347, 16
        %s349 = smul.addr %s348, 8
        %s350 = scalar_lea.vmem %s5, %s349
        %p351 = pneg %p184
        %p352 = pneg %p181
        %p353 = scmp.lt.s32.totalorder %s26, 0
        %s354 = scalar_select %p353, %s26, 0
        %s355 = scalar_lea.vmem %s6, %s354
        %p356 = pneg %p210
        %p357 = pneg %p207
        %p358 = pneg %p238
        %p359 = pneg %p235
        %s360 = sand.u32 %s225, 1
        %s361 = scalar_lea.sflag [#allocation3], %s360
        %s362 = sand.u32 %s225, 1
        %s363 = smul.addr %s362, 152
        %s364 = scalar_lea.vmem [#allocation2], %s363
        %s365 = smul.u32 19, %s25
        %p366 = scmp.lt.s32.totalorder %s365, 37
        %s367 = scalar_select %p366, %s365, 37
        %s368 = smul.addr %s367, 8
        %s369 = scalar_lea.vmem %s0, %s368
        %s370 = smul.u32 19, %s25
        %p371 = scmp.lt.s32.totalorder %s26, 0
        %s372 = scalar_select %p371, %s26, 0
        %s373 = smul.addr %s372, 4
        %s374 = smul.addr %s373, 8
        %s375 = scalar_lea.vmem %s1, %s374
        %p376 = scmp.lt.s32.totalorder %s26, 0
        %s377 = scalar_select %p376, %s26, 0
        %s378 = scalar_lea.vmem %s2, %s377
        %p379 = scmp.lt.s32.totalorder %s26, 0
        %s380 = scalar_select %p379, %s26, 0
        %s381 = smul.addr %s380, 16
        %s382 = smul.addr %s381, 8
        %s383 = scalar_lea.vmem %s3, %s382
        %p384 = scmp.lt.s32.totalorder %s26, 0
        %s385 = scalar_select %p384, %s26, 0
        %s386 = scalar_lea.vmem %s4, %s385
        %p387 = scmp.lt.s32.totalorder %s26, 0
        %s388 = scalar_select %p387, %s26, 0
        %s389 = smul.addr %s388, 16
        %s390 = smul.addr %s389, 8
        %s391 = scalar_lea.vmem %s5, %s390
        %p392 = scmp.lt.s32.totalorder %s26, 0
        %s393 = scalar_select %p392, %s26, 0
        %s394 = scalar_lea.vmem %s6, %s393
        %s395 = smul.u32 19, %s25
        %v396 = vld [vmem:[%s369] sm:$0xff]
        %v397 = vld [vmem:[%s369 + $0x8] sm:$0xff]
        %v398 = vld [vmem:[%s369 + $0x10] sm:$0xff]
        %v399 = vld [vmem:[%s369 + $0x18] sm:$0xff]
        %v400 = vld [vmem:[%s369 + $0x20] sm:$0xff]
        %v401 = vld [vmem:[%s369 + $0x28] sm:$0xff]
        %v402 = vld [vmem:[%s369 + $0x30] sm:$0xff]
        %v403 = vld [vmem:[%s369 + $0x38] sm:$0xff]
        %v404 = vld [vmem:[%s369 + $0x40] sm:$0xff]
        %v405 = vld [vmem:[%s369 + $0x48] sm:$0xff]
        %v406 = vld [vmem:[%s369 + $0x50] sm:$0xff]
        %v407 = vld [vmem:[%s369 + $0x58] sm:$0xff]
        %v408 = vld [vmem:[%s369 + $0x60] sm:$0xff]
        %v409 = vld [vmem:[%s369 + $0x68] sm:$0xff]
        %v410 = vld [vmem:[%s369 + $0x70] sm:$0xff]
        %v411 = vld [vmem:[%s369 + $0x78] sm:$0xff]
        %v412 = vld [vmem:[%s369 + $0x80] sm:$0xff]
        %v413 = vld [vmem:[%s369 + $0x88] sm:$0xff]
        %v414 = vld [vmem:[%s369 + $0x90] sm:$0xff]
        %v415 = vld [vmem:[%s375] sm:$0xff]
        %v416 = vld [vmem:[%s375 + $0x8] sm:$0xff]
        %v417 = vld [vmem:[%s375 + $0x10] sm:$0xff]
        %v418 = vld [vmem:[%s375 + $0x18] sm:$0xff]
        %v419 = vld [vmem:[%s378] sm:$0x1]
        %v421 = vperm.slane %v419, 0
        %vm423 = vcmask 261120
        %v425 = vsel %vm423, %v396, 0
        %v428 = vsel %vm423, %v397, 0
        %v431 = vsel %vm423, %v398, 0
        %v434 = vsel %vm423, %v399, 0
        %v437 = vsel %vm423, %v400, 0
        %v440 = vsel %vm423, %v401, 0
        %v443 = vsel %vm423, %v402, 0
        %v446 = vsel %vm423, %v403, 0
        %v449 = vsel %vm423, %v404, 0
        %v452 = vsel %vm423, %v405, 0
        %v455 = vsel %vm423, %v406, 0
        %v458 = vsel %vm423, %v407, 0
        %v461 = vsel %vm423, %v408, 0
        %v464 = vsel %vm423, %v409, 0
        %v467 = vsel %vm423, %v410, 0
        %v470 = vsel %vm423, %v411, 0
        %v473 = vsel %vm423, %v412, 0
        %v476 = vsel %vm423, %v413, 0
        %v479 = vsel %vm423, %v414, 0
        %481 = vmatpush.msra.mxu0 0.0
        %482 = vmatpush.msra.mxu0 0.0
        %483 = vmatpush.msra.mxu0 0.0
        %484 = vmatpush.msra.mxu0 0.0
        %485 = vmatpush.msra.mxu0 0.0
        %486 = vmatpush.msra.mxu0 0.0
        %487 = vmatpush.msra.mxu0 0.0
        %488 = vmatpush.msra.mxu0 0.0
        %489 = vmatpush.msra.mxu0 0.0
        %490 = vmatpush.msra.mxu0 0.0
        %491 = vmatpush.msra.mxu0 0.0
        %492 = vmatpush.msra.mxu0 0.0
        %493 = vmatpush.msra.mxu0 %v418
        %494 = vmatpush.msra.mxu0 %v417
        %495 = vmatpush.msra.mxu0 %v416
        %496 = vmatpush.msra.mxu0 %v415
        %497 = vmatmul.f32.gmra.mxu0 %v425
        %v498 = vpop.f32.mrf.mxu0
        %v499 = vadd.f32 %v421, %v498
        %500 = vmatmul.f32.gmra.mxu0 %v428
        %v501 = vpop.f32.mrf.mxu0
        %v502 = vadd.f32 %v421, %v501
        %503 = vmatmul.f32.gmra.mxu0 %v431
        %v504 = vpop.f32.mrf.mxu0
        %v505 = vadd.f32 %v421, %v504
        %506 = vmatmul.f32.gmra.mxu0 %v434
        %v507 = vpop.f32.mrf.mxu0
        %v508 = vadd.f32 %v421, %v507
        %509 = vmatmul.f32.gmra.mxu0 %v437
        %v510 = vpop.f32.mrf.mxu0
        %v511 = vadd.f32 %v421, %v510
        %512 = vmatmul.f32.gmra.mxu0 %v440
        %v513 = vpop.f32.mrf.mxu0
        %v514 = vadd.f32 %v421, %v513
        %515 = vmatmul.f32.gmra.mxu0 %v443
        %v516 = vpop.f32.mrf.mxu0
        %v517 = vadd.f32 %v421, %v516
        %518 = vmatmul.f32.gmra.mxu0 %v446
        %v519 = vpop.f32.mrf.mxu0
        %v520 = vadd.f32 %v421, %v519
        %521 = vmatmul.f32.gmra.mxu0 %v449
        %v522 = vpop.f32.mrf.mxu0
        %v523 = vadd.f32 %v421, %v522
        %524 = vmatmul.f32.gmra.mxu0 %v452
        %v525 = vpop.f32.mrf.mxu0
        %v526 = vadd.f32 %v421, %v525
        %527 = vmatmul.f32.gmra.mxu0 %v455
        %v528 = vpop.f32.mrf.mxu0
        %v529 = vadd.f32 %v421, %v528
        %530 = vmatmul.f32.gmra.mxu0 %v458
        %v531 = vpop.f32.mrf.mxu0
        %v532 = vadd.f32 %v421, %v531
        %533 = vmatmul.f32.gmra.mxu0 %v461
        %v534 = vpop.f32.mrf.mxu0
        %v535 = vadd.f32 %v421, %v534
        %536 = vmatmul.f32.gmra.mxu0 %v464
        %v537 = vpop.f32.mrf.mxu0
        %v538 = vadd.f32 %v421, %v537
        %539 = vmatmul.f32.gmra.mxu0 %v467
        %v540 = vpop.f32.mrf.mxu0
        %v541 = vadd.f32 %v421, %v540
        %542 = vmatmul.f32.gmra.mxu0 %v470
        %v543 = vpop.f32.mrf.mxu0
        %v544 = vadd.f32 %v421, %v543
        %545 = vmatmul.f32.gmra.mxu0 %v473
        %v546 = vpop.f32.mrf.mxu0
        %v547 = vadd.f32 %v421, %v546
        %548 = vmatmul.f32.gmra.mxu0 %v476
        %v549 = vpop.f32.mrf.mxu0
        %v550 = vadd.f32 %v421, %v549
        %551 = vmatmul.f32.gmra.mxu0 %v479
        %v552 = vpop.f32.mrf.mxu0
        %v553 = vadd.f32 %v421, %v552
        %554 = vdwg.mxu0
        %v555 = vmax.f32 %v499, 0.0
        %v556 = vmax.f32 %v502, 0.0
        %v557 = vmax.f32 %v505, 0.0
        %v558 = vmax.f32 %v508, 0.0
        %v559 = vmax.f32 %v511, 0.0
        %v560 = vmax.f32 %v514, 0.0
        %v561 = vmax.f32 %v517, 0.0
        %v562 = vmax.f32 %v520, 0.0
        %v563 = vmax.f32 %v523, 0.0
        %v564 = vmax.f32 %v526, 0.0
        %v565 = vmax.f32 %v529, 0.0
        %v566 = vmax.f32 %v532, 0.0
        %v567 = vmax.f32 %v535, 0.0
        %v568 = vmax.f32 %v538, 0.0
        %v569 = vmax.f32 %v541, 0.0
        %v570 = vmax.f32 %v544, 0.0
        %v571 = vmax.f32 %v547, 0.0
        %v572 = vmax.f32 %v550, 0.0
        %v573 = vmax.f32 %v553, 0.0
        %v574 = vld [vmem:[%s383] sm:$0xff]
        %v575 = vld [vmem:[%s383 + $0x8] sm:$0xff]
        %v576 = vld [vmem:[%s383 + $0x10] sm:$0xff]
        %v577 = vld [vmem:[%s383 + $0x18] sm:$0xff]
        %v578 = vld [vmem:[%s383 + $0x20] sm:$0xff]
        %v579 = vld [vmem:[%s383 + $0x28] sm:$0xff]
        %v580 = vld [vmem:[%s383 + $0x30] sm:$0xff]
        %v581 = vld [vmem:[%s383 + $0x38] sm:$0xff]
        %v582 = vld [vmem:[%s383 + $0x40] sm:$0xff]
        %v583 = vld [vmem:[%s383 + $0x48] sm:$0xff]
        %v584 = vld [vmem:[%s383 + $0x50] sm:$0xff]
        %v585 = vld [vmem:[%s383 + $0x58] sm:$0xff]
        %v586 = vld [vmem:[%s383 + $0x60] sm:$0xff]
        %v587 = vld [vmem:[%s383 + $0x68] sm:$0xff]
        %v588 = vld [vmem:[%s383 + $0x70] sm:$0xff]
        %v589 = vld [vmem:[%s383 + $0x78] sm:$0xff]
        %v590 = vld [vmem:[%s386] sm:$0x1]
        %v592 = vperm.slane %v590, 0
        %594 = vmatpush.msra.mxu0 %v589
        %595 = vmatpush.msra.mxu0 %v588
        %596 = vmatpush.msra.mxu0 %v587
        %597 = vmatpush.msra.mxu0 %v586
        %598 = vmatpush.msra.mxu0 %v585
        %599 = vmatpush.msra.mxu0 %v584
        %600 = vmatpush.msra.mxu0 %v583
        %601 = vmatpush.msra.mxu0 %v582
        %602 = vmatpush.msra.mxu0 %v581
        %603 = vmatpush.msra.mxu0 %v580
        %604 = vmatpush.msra.mxu0 %v579
        %605 = vmatpush.msra.mxu0 %v578
        %606 = vmatpush.msra.mxu0 %v577
        %607 = vmatpush.msra.mxu0 %v576
        %608 = vmatpush.msra.mxu0 %v575
        %609 = vmatpush.msra.mxu0 %v574
        %610 = vmatmul.f32.gmra.mxu0 %v555
        %v611 = vpop.f32.mrf.mxu0
        %v612 = vadd.f32 %v592, %v611
        %613 = vmatmul.f32.gmra.mxu0 %v556
        %v614 = vpop.f32.mrf.mxu0
        %v615 = vadd.f32 %v592, %v614
        %616 = vmatmul.f32.gmra.mxu0 %v557
        %v617 = vpop.f32.mrf.mxu0
        %v618 = vadd.f32 %v592, %v617
        %619 = vmatmul.f32.gmra.mxu0 %v558
        %v620 = vpop.f32.mrf.mxu0
        %v621 = vadd.f32 %v592, %v620
        %622 = vmatmul.f32.gmra.mxu0 %v559
        %v623 = vpop.f32.mrf.mxu0
        %v624 = vadd.f32 %v592, %v623
        %625 = vmatmul.f32.gmra.mxu0 %v560
        %v626 = vpop.f32.mrf.mxu0
        %v627 = vadd.f32 %v592, %v626
        %628 = vmatmul.f32.gmra.mxu0 %v561
        %v629 = vpop.f32.mrf.mxu0
        %v630 = vadd.f32 %v592, %v629
        %631 = vmatmul.f32.gmra.mxu0 %v562
        %v632 = vpop.f32.mrf.mxu0
        %v633 = vadd.f32 %v592, %v632
        %634 = vmatmul.f32.gmra.mxu0 %v563
        %v635 = vpop.f32.mrf.mxu0
        %v636 = vadd.f32 %v592, %v635
        %637 = vmatmul.f32.gmra.mxu0 %v564
        %v638 = vpop.f32.mrf.mxu0
        %v639 = vadd.f32 %v592, %v638
        %640 = vmatmul.f32.gmra.mxu0 %v565
        %v641 = vpop.f32.mrf.mxu0
        %v642 = vadd.f32 %v592, %v641
        %643 = vmatmul.f32.gmra.mxu0 %v566
        %v644 = vpop.f32.mrf.mxu0
        %v645 = vadd.f32 %v592, %v644
        %646 = vmatmul.f32.gmra.mxu0 %v567
        %v647 = vpop.f32.mrf.mxu0
        %v648 = vadd.f32 %v592, %v647
        %649 = vmatmul.f32.gmra.mxu0 %v568
        %v650 = vpop.f32.mrf.mxu0
        %v651 = vadd.f32 %v592, %v650
        %652 = vmatmul.f32.gmra.mxu0 %v569
        %v653 = vpop.f32.mrf.mxu0
        %v654 = vadd.f32 %v592, %v653
        %655 = vmatmul.f32.gmra.mxu0 %v570
        %v656 = vpop.f32.mrf.mxu0
        %v657 = vadd.f32 %v592, %v656
        %658 = vmatmul.f32.gmra.mxu0 %v571
        %v659 = vpop.f32.mrf.mxu0
        %v660 = vadd.f32 %v592, %v659
        %661 = vmatmul.f32.gmra.mxu0 %v572
        %v662 = vpop.f32.mrf.mxu0
        %v663 = vadd.f32 %v592, %v662
        %664 = vmatmul.f32.gmra.mxu0 %v573
        %v665 = vpop.f32.mrf.mxu0
        %v666 = vadd.f32 %v592, %v665
        %667 = vdwg.mxu0
        %v668 = vmax.f32 %v612, 0.0
        %v669 = vmax.f32 %v615, 0.0
        %v670 = vmax.f32 %v618, 0.0
        %v671 = vmax.f32 %v621, 0.0
        %v672 = vmax.f32 %v624, 0.0
        %v673 = vmax.f32 %v627, 0.0
        %v674 = vmax.f32 %v630, 0.0
        %v675 = vmax.f32 %v633, 0.0
        %v676 = vmax.f32 %v636, 0.0
        %v677 = vmax.f32 %v639, 0.0
        %v678 = vmax.f32 %v642, 0.0
        %v679 = vmax.f32 %v645, 0.0
        %v680 = vmax.f32 %v648, 0.0
        %v681 = vmax.f32 %v651, 0.0
        %v682 = vmax.f32 %v654, 0.0
        %v683 = vmax.f32 %v657, 0.0
        %v684 = vmax.f32 %v660, 0.0
        %v685 = vmax.f32 %v663, 0.0
        %v686 = vmax.f32 %v666, 0.0
        %v687 = vld [vmem:[%s391] sm:$0xff]
        %v688 = vld [vmem:[%s391 + $0x8] sm:$0xff]
        %v689 = vld [vmem:[%s391 + $0x10] sm:$0xff]
        %v690 = vld [vmem:[%s391 + $0x18] sm:$0xff]
        %v691 = vld [vmem:[%s391 + $0x20] sm:$0xff]
        %v692 = vld [vmem:[%s391 + $0x28] sm:$0xff]
        %v693 = vld [vmem:[%s391 + $0x30] sm:$0xff]
        %v694 = vld [vmem:[%s391 + $0x38] sm:$0xff]
        %v695 = vld [vmem:[%s391 + $0x40] sm:$0xff]
        %v696 = vld [vmem:[%s391 + $0x48] sm:$0xff]
        %v697 = vld [vmem:[%s391 + $0x50] sm:$0xff]
        %v698 = vld [vmem:[%s391 + $0x58] sm:$0xff]
        %v699 = vld [vmem:[%s391 + $0x60] sm:$0xff]
        %v700 = vld [vmem:[%s391 + $0x68] sm:$0xff]
        %v701 = vld [vmem:[%s391 + $0x70] sm:$0xff]
        %v702 = vld [vmem:[%s391 + $0x78] sm:$0xff]
        %v703 = vld [vmem:[%s394] sm:$0x1]
        %v705 = vperm.slane %v703, 0
        %707 = vmatpush.msra.mxu0 %v702
        %708 = vmatpush.msra.mxu0 %v701
        %709 = vmatpush.msra.mxu0 %v700
        %710 = vmatpush.msra.mxu0 %v699
        %711 = vmatpush.msra.mxu0 %v698
        %712 = vmatpush.msra.mxu0 %v697
        %713 = vmatpush.msra.mxu0 %v696
        %714 = vmatpush.msra.mxu0 %v695
        %715 = vmatpush.msra.mxu0 %v694
        %716 = vmatpush.msra.mxu0 %v693
        %717 = vmatpush.msra.mxu0 %v692
        %718 = vmatpush.msra.mxu0 %v691
        %719 = vmatpush.msra.mxu0 %v690
        %720 = vmatpush.msra.mxu0 %v689
        %721 = vmatpush.msra.mxu0 %v688
        %722 = vmatpush.msra.mxu0 %v687
        %723 = vmatmul.f32.gmra.mxu0 %v668
        %v724 = vpop.f32.mrf.mxu0
        %v725 = vadd.f32 %v705, %v724
        %726 = vmatmul.f32.gmra.mxu0 %v669
        %v727 = vpop.f32.mrf.mxu0
        %v728 = vadd.f32 %v705, %v727
        %729 = vmatmul.f32.gmra.mxu0 %v670
        %v730 = vpop.f32.mrf.mxu0
        %v731 = vadd.f32 %v705, %v730
        %732 = vmatmul.f32.gmra.mxu0 %v671
        %v733 = vpop.f32.mrf.mxu0
        %v734 = vadd.f32 %v705, %v733
        %735 = vmatmul.f32.gmra.mxu0 %v672
        %v736 = vpop.f32.mrf.mxu0
        %v737 = vadd.f32 %v705, %v736
        %738 = vmatmul.f32.gmra.mxu0 %v673
        %v739 = vpop.f32.mrf.mxu0
        %v740 = vadd.f32 %v705, %v739
        %741 = vmatmul.f32.gmra.mxu0 %v674
        %v742 = vpop.f32.mrf.mxu0
        %v743 = vadd.f32 %v705, %v742
        %744 = vmatmul.f32.gmra.mxu0 %v675
        %v745 = vpop.f32.mrf.mxu0
        %v746 = vadd.f32 %v705, %v745
        %747 = vmatmul.f32.gmra.mxu0 %v676
        %v748 = vpop.f32.mrf.mxu0
        %v749 = vadd.f32 %v705, %v748
        %750 = vmatmul.f32.gmra.mxu0 %v677
        %v751 = vpop.f32.mrf.mxu0
        %v752 = vadd.f32 %v705, %v751
        %753 = vmatmul.f32.gmra.mxu0 %v678
        %v754 = vpop.f32.mrf.mxu0
        %v755 = vadd.f32 %v705, %v754
        %756 = vmatmul.f32.gmra.mxu0 %v679
        %v757 = vpop.f32.mrf.mxu0
        %v758 = vadd.f32 %v705, %v757
        %759 = vmatmul.f32.gmra.mxu0 %v680
        %v760 = vpop.f32.mrf.mxu0
        %v761 = vadd.f32 %v705, %v760
        %762 = vmatmul.f32.gmra.mxu0 %v681
        %v763 = vpop.f32.mrf.mxu0
        %v764 = vadd.f32 %v705, %v763
        %765 = vmatmul.f32.gmra.mxu0 %v682
        %v766 = vpop.f32.mrf.mxu0
        %v767 = vadd.f32 %v705, %v766
        %768 = vmatmul.f32.gmra.mxu0 %v683
        %v769 = vpop.f32.mrf.mxu0
        %v770 = vadd.f32 %v705, %v769
        %771 = vmatmul.f32.gmra.mxu0 %v684
        %v772 = vpop.f32.mrf.mxu0
        %v773 = vadd.f32 %v705, %v772
        %774 = vmatmul.f32.gmra.mxu0 %v685
        %v775 = vpop.f32.mrf.mxu0
        %v776 = vadd.f32 %v705, %v775
        %777 = vmatmul.f32.gmra.mxu0 %v686
        %v778 = vpop.f32.mrf.mxu0
        %v779 = vadd.f32 %v705, %v778
        %780 = vdwg.mxu0
        %781 = vst [vmem:[%s364] sm:$0xff] %v725
        %782 = vst [vmem:[%s364 + $0x8] sm:$0xff] %v728
        %783 = vst [vmem:[%s364 + $0x10] sm:$0xff] %v731
        %784 = vst [vmem:[%s364 + $0x18] sm:$0xff] %v734
        %785 = vst [vmem:[%s364 + $0x20] sm:$0xff] %v737
        %786 = vst [vmem:[%s364 + $0x28] sm:$0xff] %v740
        %787 = vst [vmem:[%s364 + $0x30] sm:$0xff] %v743
        %788 = vst [vmem:[%s364 + $0x38] sm:$0xff] %v746
        %789 = vst [vmem:[%s364 + $0x40] sm:$0xff] %v749
        %790 = vst [vmem:[%s364 + $0x48] sm:$0xff] %v752
        %791 = vst [vmem:[%s364 + $0x50] sm:$0xff] %v755
        %792 = vst [vmem:[%s364 + $0x58] sm:$0xff] %v758
        %793 = vst [vmem:[%s364 + $0x60] sm:$0xff] %v761
        %794 = vst [vmem:[%s364 + $0x68] sm:$0xff] %v764
        %795 = vst [vmem:[%s364 + $0x70] sm:$0xff] %v767
        %796 = vst [vmem:[%s364 + $0x78] sm:$0xff] %v770
        %797 = vst [vmem:[%s364 + $0x80] sm:$0xff] %v773
        %798 = vst [vmem:[%s364 + $0x88] sm:$0xff] %v776
        %799 = vst [vmem:[%s364 + $0x90] sm:$0xff] %v779
        %s800 = sand.u32 %s225, 1
        %s801 = scalar_lea.sflag [#allocation3], %s800
        %s802 = sand.u32 %s225, 1
        %s803 = smul.addr %s802, 152
        %s804 = scalar_lea.vmem [#allocation2], %s803
        // Predicated region
        $region49: #{tpu_custom_call.1} parent=47 // pred_check
          %p805 = pneg %p235
        $region50: #{tpu_custom_call.1} parent=47 // pred_check_branch
          %807 = sbr.rel (%p805) target = $region52
        $region51: #{tpu_custom_call.1} parent=47 // pred_region
          %s808 = smul.u32 19, %s25
          %810 = vsyncadd %s801, 0
          %s811 = sadd.s32 %s26, %s808
          %s812 = smul.addr %s811, 8
          %s813 = scalar_lea.hbm %s7, %s812
          %s814 = sshll.u32 %s804, 4
          %s815 = int_to_ptr.vmem [resolvable:$true] %s814
          %s816 = sshll.u32 %s813, 4
          %s817 = int_to_ptr.hbm [resolvable:$true] %s816
          %822 = dma.vmem_to_hbm [thread:$0]  %s815, 2432, %s817, %s801, 128, 128, 8
        $region52: #{tpu_custom_call.1} parent=47 // pred_fallthru
          _
      $region48: #{tpu_custom_call.1} parent=5 // pred_fallthru
        _
      %p823 = scmp.le.s32.totalorder 2, %s16
      // Predicated region
      $region53: #{tpu_custom_call.1} parent=5 // pred_check
        %p824 = pneg %p823
      $region54: #{tpu_custom_call.1} parent=5 // pred_check_branch
        %826 = sbr.rel (%p824) target = $region56
      $region55: #{tpu_custom_call.1} parent=5 // pred_region
        %s827 = ssub.s32 %s16, 2
        // Predicated region
        $region57: #{tpu_custom_call.1} parent=55 // pred_check
          %p828 = pneg %p241
        $region58: #{tpu_custom_call.1} parent=55 // pred_check_branch
          %830 = sbr.rel (%p828) target = $region60
        $region59: #{tpu_custom_call.1} parent=55 // pred_region
          %s831 = sand.u32 %s226, 1
          %s832 = scalar_lea.sflag [#allocation3], %s831
          %s833 = sand.u32 %s226, 1
          %s834 = smul.addr %s833, 152
          %s835 = scalar_lea.vmem [#allocation2], %s834
          %837 = dma.done %s832, 2432
        $region60: #{tpu_custom_call.1} parent=55 // pred_fallthru
          _
      $region56: #{tpu_custom_call.1} parent=5 // pred_fallthru
        _
    $region6: #{tpu_custom_call.1} parent=1 // loop_footer
      %s20 = sadd.s32 1, %s16
    $region7: #{tpu_custom_call.1} parent=1 // loop_footer_branch
      %15 = sbr.rel target = $region3
    $region8: #{tpu_custom_call.1} parent=1 // loop_exit
      _
    %838 = vsyncpa [#allocation3], 1
    %s839 = scalar_lea.sflag [#allocation3], 1
    %840 = vsyncpa %s839, 1

</llo_original>
